<compile_context>
chip_gen: v6e
topology: v6e:2x2x1
jax: 0.10.0
libtpu: 0.0.40
codegen_flags: <defaults>
</compile_context>

<pallas_src>
import math

import jax
import jax.numpy as jnp
from jax.experimental import pallas as pl
from jax.experimental.pallas import tpu as pltpu

HIDDEN_DIM = 5
NUM_IN = 4
NUM_OU = 1


def mlp_kernel(x_ref, w1_ref, b1_ref, w2_ref, b2_ref, w3_ref, b3_ref, o_ref):
    def dense_tanh(h, w_ref, b_ref):
        # Unrolled VPU FMA chain over the (tiny) contraction dim; no MXU.
        k_dim, n_dim = w_ref.shape
        acc = jnp.broadcast_to(b_ref[...], (h.shape[0], n_dim)).astype(jnp.float32)
        for k in range(k_dim):  # static Python unroll, K in {4, 5}
            acc = acc + h[:, k : k + 1] * w_ref[k, :]
        return jnp.tanh(acc)  # tanh -> EUP slot

    x = x_ref[...].astype(jnp.float32)          # (TB, NUM_IN)
    h1 = dense_tanh(x, w1_ref, b1_ref)          # (TB, HIDDEN_DIM)
    h2 = dense_tanh(h1, w2_ref, b2_ref)         # (TB, HIDDEN_DIM)
    h3 = dense_tanh(h2, w3_ref, b3_ref)         # (TB, NUM_OU)
    # NOTE: last dim is 1 (< 128 lanes) -> masked vst; negligible at NUM_OU=1.
    o_ref[...] = h3.astype(o_ref.dtype)


def neural_network_forward(x, params, max_tile=1024):
    """Run the fused MLP Pallas kernel.

    x: (B, NUM_IN) float32
    params: dict with w1 (NUM_IN, H), b1 (1, H), w2 (H, H), b2 (1, H),
            w3 (H, NUM_OU), b3 (1, NUM_OU)
    """
    B = x.shape[0]
    w1, b1 = params["w1"], params["b1"]
    w2, b2 = params["w2"], params["b2"]
    w3, b3 = params["w3"], params["b3"]

    # Batch tile: multiple of 8 (sublane rule), capped at max_tile rows.
    tb = max(8, (min(max_tile, B) // 8) * 8)
    b_pad = pl.cdiv(B, tb) * tb
    if b_pad != B:
        x = jnp.pad(x, ((0, b_pad - B), (0, 0)))
    grid = (b_pad // tb,)

    # Weights/biases: full-array blocks, constant index_map -> resident in VMEM.
    resident = lambda a: pl.BlockSpec(a.shape, lambda i: (0,) * a.ndim)

    out = pl.pallas_call(
        mlp_kernel,
        out_shape=jax.ShapeDtypeStruct((b_pad, NUM_OU), jnp.float32),
        grid=grid,
        in_specs=[
            pl.BlockSpec((tb, NUM_IN), lambda i: (i, 0)),   # x, tiled over batch
            resident(w1), resident(b1),
            resident(w2), resident(b2),
            resident(w3), resident(b3),
        ],
        out_specs=pl.BlockSpec((tb, NUM_OU), lambda i: (i, 0)),
        compiler_params=pltpu.CompilerParams(
            dimension_semantics=("parallel",),  # shard batch grid across v7x's 2 TCs
        ),
    )(x, w1, b1, w2, b2, w3, b3)

    return out[:B]


def xavier_uniform(key, fan_in, fan_out):
    # Matches torch.nn.init.xavier_uniform_ (gain=1.0).
    bound = math.sqrt(6.0 / (fan_in + fan_out))
    # Torch stores Linear weight as (out, in); sample in that shape then
    # transpose to (in, out) for the kernel's x @ W convention.
    w = jax.random.uniform(
        key, (fan_out, fan_in), jnp.float32, minval=-bound, maxval=bound
    )
    return w.T


def linear_bias_init(key, fan_in, fan_out):
    # nn.Linear default bias init: U(-1/sqrt(fan_in), 1/sqrt(fan_in)).
    bound = 1.0 / math.sqrt(fan_in)
    return jax.random.uniform(
        key, (1, fan_out), jnp.float32, minval=-bound, maxval=bound
    )


def init_params(key):
    k1, k2, k3, k4, k5, k6 = jax.random.split(key, 6)
    return {
        "w1": xavier_uniform(k1, NUM_IN, HIDDEN_DIM),
        "b1": linear_bias_init(k2, NUM_IN, HIDDEN_DIM),
        "w2": xavier_uniform(k3, HIDDEN_DIM, HIDDEN_DIM),
        "b2": linear_bias_init(k4, HIDDEN_DIM, HIDDEN_DIM),
        "w3": xavier_uniform(k5, HIDDEN_DIM, NUM_OU),
        "b3": linear_bias_init(k6, HIDDEN_DIM, NUM_OU),
    }


def reference_forward(x, p):
    h1 = jnp.tanh(x @ p["w1"] + p["b1"])
    h2 = jnp.tanh(h1 @ p["w2"] + p["b2"])
    return jnp.tanh(h2 @ p["w3"] + p["b3"])


if __name__ == "__main__":
    key = jax.random.PRNGKey(0)
    kp, kx1, kx2 = jax.random.split(key, 3)
    params = init_params(kp)

    # Small batch: single grid step.
    x_small = jax.random.normal(kx1, (8, NUM_IN), jnp.float32)
    out_small = jax.block_until_ready(neural_network_forward(x_small, params))
    ref_small = reference_forward(x_small, params)
    assert out_small.shape == (8, NUM_OU)
    assert jnp.allclose(out_small, ref_small, atol=1e-5, rtol=1e-5)

    # Ragged batch: exercises the batch grid (2 steps, TB=16) + pad/slice path.
    x_ragged = jax.random.normal(kx2, (20, NUM_IN), jnp.float32)
    out_ragged = jax.block_until_ready(
        neural_network_forward(x_ragged, params, max_tile=16)
    )
    ref_ragged = reference_forward(x_ragged, params)
    assert out_ragged.shape == (20, NUM_OU)
    assert jnp.allclose(out_ragged, ref_ragged, atol=1e-5, rtol=1e-5)

    print("KERNEL_OK")
</pallas_src>

<mosaic_0001>
module attributes {stable_mosaic.version = 11 : i64} {
  func.func @mlp_kernel(%arg0: i32, %arg1: memref<8x4xf32, #tpu.memory_space<vmem>>, %arg2: memref<4x5xf32, #tpu.memory_space<vmem>>, %arg3: memref<1x5xf32, #tpu.memory_space<vmem>>, %arg4: memref<5x5xf32, #tpu.memory_space<vmem>>, %arg5: memref<1x5xf32, #tpu.memory_space<vmem>>, %arg6: memref<5x1xf32, #tpu.memory_space<vmem>>, %arg7: memref<1x1xf32, #tpu.memory_space<vmem>>, %arg8: memref<8x1xf32, #tpu.memory_space<vmem>>) attributes {dimension_semantics = [#tpu.dimension_semantics<parallel>], iteration_bounds = array<i64: 1>, scalar_prefetch = 0 : i64, scratch_operands = 0 : i64, tpu.core_type = #tpu.core_type<tc>, window_params = [{transform_indices = @transform_0, window_bounds = array<i64: 8, 4>}, {pipeline_mode = #tpu.pipeline_mode<synchronous>, transform_indices = @transform_1, window_bounds = array<i64: 4, 5>}, {pipeline_mode = #tpu.pipeline_mode<synchronous>, transform_indices = @transform_2, window_bounds = array<i64: 1, 5>}, {pipeline_mode = #tpu.pipeline_mode<synchronous>, transform_indices = @transform_3, window_bounds = array<i64: 5, 5>}, {pipeline_mode = #tpu.pipeline_mode<synchronous>, transform_indices = @transform_4, window_bounds = array<i64: 1, 5>}, {pipeline_mode = #tpu.pipeline_mode<synchronous>, transform_indices = @transform_5, window_bounds = array<i64: 5, 1>}, {pipeline_mode = #tpu.pipeline_mode<synchronous>, transform_indices = @transform_6, window_bounds = array<i64: 1, 1>}, {transform_indices = @transform_7, window_bounds = array<i64: 8, 1>}]} {
    %c0 = arith.constant 0 : index
    %c0_0 = arith.constant 0 : index
    %0 = vector.load %arg1[%c0, %c0_0] : memref<8x4xf32, #tpu.memory_space<vmem>>, vector<8x4xf32>
    %c0_1 = arith.constant 0 : index
    %c0_2 = arith.constant 0 : index
    %1 = vector.load %arg3[%c0_1, %c0_2] : memref<1x5xf32, #tpu.memory_space<vmem>>, vector<1x5xf32>
    %2 = vector.shape_cast %1 : vector<1x5xf32> to vector<1x5xf32>
    %3 = vector.broadcast %2 : vector<1x5xf32> to vector<8x5xf32>
    %4 = vector.extract_strided_slice %0 {offsets = [0, 0], sizes = [8, 1], strides = [1, 1]} : vector<8x4xf32> to vector<8x1xf32>
    %c0_3 = arith.constant 0 : index
    %c0_4 = arith.constant 0 : index
    %5 = vector.load %arg2[%c0_3, %c0_4] : memref<4x5xf32, #tpu.memory_space<vmem>>, vector<1x5xf32>
    %6 = vector.shape_cast %5 : vector<1x5xf32> to vector<5xf32>
    %7 = vector.shape_cast %6 : vector<5xf32> to vector<1x5xf32>
    %8 = vector.broadcast %4 : vector<8x1xf32> to vector<8x5xf32>
    %9 = vector.broadcast %7 : vector<1x5xf32> to vector<8x5xf32>
    %10 = arith.mulf %8, %9 : vector<8x5xf32>
    %11 = arith.addf %3, %10 : vector<8x5xf32>
    %12 = vector.extract_strided_slice %0 {offsets = [0, 1], sizes = [8, 1], strides = [1, 1]} : vector<8x4xf32> to vector<8x1xf32>
    %c1 = arith.constant 1 : index
    %c0_5 = arith.constant 0 : index
    %13 = vector.load %arg2[%c1, %c0_5] : memref<4x5xf32, #tpu.memory_space<vmem>>, vector<1x5xf32>
    %14 = vector.shape_cast %13 : vector<1x5xf32> to vector<5xf32>
    %15 = vector.shape_cast %14 : vector<5xf32> to vector<1x5xf32>
    %16 = vector.broadcast %12 : vector<8x1xf32> to vector<8x5xf32>
    %17 = vector.broadcast %15 : vector<1x5xf32> to vector<8x5xf32>
    %18 = arith.mulf %16, %17 : vector<8x5xf32>
    %19 = arith.addf %11, %18 : vector<8x5xf32>
    %20 = vector.extract_strided_slice %0 {offsets = [0, 2], sizes = [8, 1], strides = [1, 1]} : vector<8x4xf32> to vector<8x1xf32>
    %c2 = arith.constant 2 : index
    %c0_6 = arith.constant 0 : index
    %21 = vector.load %arg2[%c2, %c0_6] : memref<4x5xf32, #tpu.memory_space<vmem>>, vector<1x5xf32>
    %22 = vector.shape_cast %21 : vector<1x5xf32> to vector<5xf32>
    %23 = vector.shape_cast %22 : vector<5xf32> to vector<1x5xf32>
    %24 = vector.broadcast %20 : vector<8x1xf32> to vector<8x5xf32>
    %25 = vector.broadcast %23 : vector<1x5xf32> to vector<8x5xf32>
    %26 = arith.mulf %24, %25 : vector<8x5xf32>
    %27 = arith.addf %19, %26 : vector<8x5xf32>
    %28 = vector.extract_strided_slice %0 {offsets = [0, 3], sizes = [8, 1], strides = [1, 1]} : vector<8x4xf32> to vector<8x1xf32>
    %c3 = arith.constant 3 : index
    %c0_7 = arith.constant 0 : index
    %29 = vector.load %arg2[%c3, %c0_7] : memref<4x5xf32, #tpu.memory_space<vmem>>, vector<1x5xf32>
    %30 = vector.shape_cast %29 : vector<1x5xf32> to vector<5xf32>
    %31 = vector.shape_cast %30 : vector<5xf32> to vector<1x5xf32>
    %32 = vector.broadcast %28 : vector<8x1xf32> to vector<8x5xf32>
    %33 = vector.broadcast %31 : vector<1x5xf32> to vector<8x5xf32>
    %34 = arith.mulf %32, %33 : vector<8x5xf32>
    %35 = arith.addf %27, %34 : vector<8x5xf32>
    %36 = math.tanh %35 : vector<8x5xf32>
    %c0_8 = arith.constant 0 : index
    %c0_9 = arith.constant 0 : index
    %37 = vector.load %arg5[%c0_8, %c0_9] : memref<1x5xf32, #tpu.memory_space<vmem>>, vector<1x5xf32>
    %38 = vector.shape_cast %37 : vector<1x5xf32> to vector<1x5xf32>
    %39 = vector.broadcast %38 : vector<1x5xf32> to vector<8x5xf32>
    %40 = vector.extract_strided_slice %36 {offsets = [0, 0], sizes = [8, 1], strides = [1, 1]} : vector<8x5xf32> to vector<8x1xf32>
    %c0_10 = arith.constant 0 : index
    %c0_11 = arith.constant 0 : index
    %41 = vector.load %arg4[%c0_10, %c0_11] : memref<5x5xf32, #tpu.memory_space<vmem>>, vector<1x5xf32>
    %42 = vector.shape_cast %41 : vector<1x5xf32> to vector<5xf32>
    %43 = vector.shape_cast %42 : vector<5xf32> to vector<1x5xf32>
    %44 = vector.broadcast %40 : vector<8x1xf32> to vector<8x5xf32>
    %45 = vector.broadcast %43 : vector<1x5xf32> to vector<8x5xf32>
    %46 = arith.mulf %44, %45 : vector<8x5xf32>
    %47 = arith.addf %39, %46 : vector<8x5xf32>
    %48 = vector.extract_strided_slice %36 {offsets = [0, 1], sizes = [8, 1], strides = [1, 1]} : vector<8x5xf32> to vector<8x1xf32>
    %c1_12 = arith.constant 1 : index
    %c0_13 = arith.constant 0 : index
    %49 = vector.load %arg4[%c1_12, %c0_13] : memref<5x5xf32, #tpu.memory_space<vmem>>, vector<1x5xf32>
    %50 = vector.shape_cast %49 : vector<1x5xf32> to vector<5xf32>
    %51 = vector.shape_cast %50 : vector<5xf32> to vector<1x5xf32>
    %52 = vector.broadcast %48 : vector<8x1xf32> to vector<8x5xf32>
    %53 = vector.broadcast %51 : vector<1x5xf32> to vector<8x5xf32>
    %54 = arith.mulf %52, %53 : vector<8x5xf32>
    %55 = arith.addf %47, %54 : vector<8x5xf32>
    %56 = vector.extract_strided_slice %36 {offsets = [0, 2], sizes = [8, 1], strides = [1, 1]} : vector<8x5xf32> to vector<8x1xf32>
    %c2_14 = arith.constant 2 : index
    %c0_15 = arith.constant 0 : index
    %57 = vector.load %arg4[%c2_14, %c0_15] : memref<5x5xf32, #tpu.memory_space<vmem>>, vector<1x5xf32>
    %58 = vector.shape_cast %57 : vector<1x5xf32> to vector<5xf32>
    %59 = vector.shape_cast %58 : vector<5xf32> to vector<1x5xf32>
    %60 = vector.broadcast %56 : vector<8x1xf32> to vector<8x5xf32>
    %61 = vector.broadcast %59 : vector<1x5xf32> to vector<8x5xf32>
    %62 = arith.mulf %60, %61 : vector<8x5xf32>
    %63 = arith.addf %55, %62 : vector<8x5xf32>
    %64 = vector.extract_strided_slice %36 {offsets = [0, 3], sizes = [8, 1], strides = [1, 1]} : vector<8x5xf32> to vector<8x1xf32>
    %c3_16 = arith.constant 3 : index
    %c0_17 = arith.constant 0 : index
    %65 = vector.load %arg4[%c3_16, %c0_17] : memref<5x5xf32, #tpu.memory_space<vmem>>, vector<1x5xf32>
    %66 = vector.shape_cast %65 : vector<1x5xf32> to vector<5xf32>
    %67 = vector.shape_cast %66 : vector<5xf32> to vector<1x5xf32>
    %68 = vector.broadcast %64 : vector<8x1xf32> to vector<8x5xf32>
    %69 = vector.broadcast %67 : vector<1x5xf32> to vector<8x5xf32>
    %70 = arith.mulf %68, %69 : vector<8x5xf32>
    %71 = arith.addf %63, %70 : vector<8x5xf32>
    %72 = vector.extract_strided_slice %36 {offsets = [0, 4], sizes = [8, 1], strides = [1, 1]} : vector<8x5xf32> to vector<8x1xf32>
    %c4 = arith.constant 4 : index
    %c0_18 = arith.constant 0 : index
    %73 = vector.load %arg4[%c4, %c0_18] : memref<5x5xf32, #tpu.memory_space<vmem>>, vector<1x5xf32>
    %74 = vector.shape_cast %73 : vector<1x5xf32> to vector<5xf32>
    %75 = vector.shape_cast %74 : vector<5xf32> to vector<1x5xf32>
    %76 = vector.broadcast %72 : vector<8x1xf32> to vector<8x5xf32>
    %77 = vector.broadcast %75 : vector<1x5xf32> to vector<8x5xf32>
    %78 = arith.mulf %76, %77 : vector<8x5xf32>
    %79 = arith.addf %71, %78 : vector<8x5xf32>
    %80 = math.tanh %79 : vector<8x5xf32>
    %c0_19 = arith.constant 0 : index
    %c0_20 = arith.constant 0 : index
    %81 = vector.load %arg7[%c0_19, %c0_20] : memref<1x1xf32, #tpu.memory_space<vmem>>, vector<1x1xf32>
    %82 = vector.shape_cast %81 : vector<1x1xf32> to vector<1x1xf32>
    %83 = vector.broadcast %82 : vector<1x1xf32> to vector<8x1xf32>
    %84 = vector.extract_strided_slice %80 {offsets = [0, 0], sizes = [8, 1], strides = [1, 1]} : vector<8x5xf32> to vector<8x1xf32>
    %c0_21 = arith.constant 0 : index
    %c0_22 = arith.constant 0 : index
    %85 = vector.load %arg6[%c0_21, %c0_22] : memref<5x1xf32, #tpu.memory_space<vmem>>, vector<1x1xf32>
    %86 = vector.shape_cast %85 : vector<1x1xf32> to vector<1xf32>
    %87 = vector.shape_cast %86 : vector<1xf32> to vector<1x1xf32>
    %88 = vector.broadcast %87 : vector<1x1xf32> to vector<8x1xf32>
    %89 = arith.mulf %84, %88 : vector<8x1xf32>
    %90 = arith.addf %83, %89 : vector<8x1xf32>
    %91 = vector.extract_strided_slice %80 {offsets = [0, 1], sizes = [8, 1], strides = [1, 1]} : vector<8x5xf32> to vector<8x1xf32>
    %c1_23 = arith.constant 1 : index
    %c0_24 = arith.constant 0 : index
    %92 = vector.load %arg6[%c1_23, %c0_24] : memref<5x1xf32, #tpu.memory_space<vmem>>, vector<1x1xf32>
    %93 = vector.shape_cast %92 : vector<1x1xf32> to vector<1xf32>
    %94 = vector.shape_cast %93 : vector<1xf32> to vector<1x1xf32>
    %95 = vector.broadcast %94 : vector<1x1xf32> to vector<8x1xf32>
    %96 = arith.mulf %91, %95 : vector<8x1xf32>
    %97 = arith.addf %90, %96 : vector<8x1xf32>
    %98 = vector.extract_strided_slice %80 {offsets = [0, 2], sizes = [8, 1], strides = [1, 1]} : vector<8x5xf32> to vector<8x1xf32>
    %c2_25 = arith.constant 2 : index
    %c0_26 = arith.constant 0 : index
    %99 = vector.load %arg6[%c2_25, %c0_26] : memref<5x1xf32, #tpu.memory_space<vmem>>, vector<1x1xf32>
    %100 = vector.shape_cast %99 : vector<1x1xf32> to vector<1xf32>
    %101 = vector.shape_cast %100 : vector<1xf32> to vector<1x1xf32>
    %102 = vector.broadcast %101 : vector<1x1xf32> to vector<8x1xf32>
    %103 = arith.mulf %98, %102 : vector<8x1xf32>
    %104 = arith.addf %97, %103 : vector<8x1xf32>
    %105 = vector.extract_strided_slice %80 {offsets = [0, 3], sizes = [8, 1], strides = [1, 1]} : vector<8x5xf32> to vector<8x1xf32>
    %c3_27 = arith.constant 3 : index
    %c0_28 = arith.constant 0 : index
    %106 = vector.load %arg6[%c3_27, %c0_28] : memref<5x1xf32, #tpu.memory_space<vmem>>, vector<1x1xf32>
    %107 = vector.shape_cast %106 : vector<1x1xf32> to vector<1xf32>
    %108 = vector.shape_cast %107 : vector<1xf32> to vector<1x1xf32>
    %109 = vector.broadcast %108 : vector<1x1xf32> to vector<8x1xf32>
    %110 = arith.mulf %105, %109 : vector<8x1xf32>
    %111 = arith.addf %104, %110 : vector<8x1xf32>
    %112 = vector.extract_strided_slice %80 {offsets = [0, 4], sizes = [8, 1], strides = [1, 1]} : vector<8x5xf32> to vector<8x1xf32>
    %c4_29 = arith.constant 4 : index
    %c0_30 = arith.constant 0 : index
    %113 = vector.load %arg6[%c4_29, %c0_30] : memref<5x1xf32, #tpu.memory_space<vmem>>, vector<1x1xf32>
    %114 = vector.shape_cast %113 : vector<1x1xf32> to vector<1xf32>
    %115 = vector.shape_cast %114 : vector<1xf32> to vector<1x1xf32>
    %116 = vector.broadcast %115 : vector<1x1xf32> to vector<8x1xf32>
    %117 = arith.mulf %112, %116 : vector<8x1xf32>
    %118 = arith.addf %111, %117 : vector<8x1xf32>
    %119 = math.tanh %118 : vector<8x1xf32>
    %c0_31 = arith.constant 0 : index
    %c0_32 = arith.constant 0 : index
    %120 = vector.load %arg8[%c0_31, %c0_32] : memref<8x1xf32, #tpu.memory_space<vmem>>, vector<8x1xf32>
    tpu.vector_store %arg8[%c0_31, %c0_32], %119 {strides = array<i32>} : memref<8x1xf32, #tpu.memory_space<vmem>>, vector<8x1xf32>,
    return
  }
  func.func @transform_0(%arg0: i32) -> (i32, i32) {
    %c0_i32 = arith.constant 0 : i32
    %c0_i32_0 = arith.constant 0 : i32
    return %arg0, %c0_i32 : i32, i32
  }
  func.func @transform_1(%arg0: i32) -> (i32, i32) {
    %c0_i32 = arith.constant 0 : i32
    %c0_i32_0 = arith.constant 0 : i32
    %c0_i32_1 = arith.constant 0 : i32
    return %c0_i32, %c0_i32_0 : i32, i32
  }
  func.func @transform_2(%arg0: i32) -> (i32, i32) {
    %c0_i32 = arith.constant 0 : i32
    %c0_i32_0 = arith.constant 0 : i32
    %c0_i32_1 = arith.constant 0 : i32
    return %c0_i32, %c0_i32_0 : i32, i32
  }
  func.func @transform_3(%arg0: i32) -> (i32, i32) {
    %c0_i32 = arith.constant 0 : i32
    %c0_i32_0 = arith.constant 0 : i32
    %c0_i32_1 = arith.constant 0 : i32
    return %c0_i32, %c0_i32_0 : i32, i32
  }
  func.func @transform_4(%arg0: i32) -> (i32, i32) {
    %c0_i32 = arith.constant 0 : i32
    %c0_i32_0 = arith.constant 0 : i32
    %c0_i32_1 = arith.constant 0 : i32
    return %c0_i32, %c0_i32_0 : i32, i32
  }
  func.func @transform_5(%arg0: i32) -> (i32, i32) {
    %c0_i32 = arith.constant 0 : i32
    %c0_i32_0 = arith.constant 0 : i32
    %c0_i32_1 = arith.constant 0 : i32
    return %c0_i32, %c0_i32_0 : i32, i32
  }
  func.func @transform_6(%arg0: i32) -> (i32, i32) {
    %c0_i32 = arith.constant 0 : i32
    %c0_i32_0 = arith.constant 0 : i32
    %c0_i32_1 = arith.constant 0 : i32
    return %c0_i32, %c0_i32_0 : i32, i32
  }
  func.func @transform_7(%arg0: i32) -> (i32, i32) {
    %c0_i32 = arith.constant 0 : i32
    %c0_i32_0 = arith.constant 0 : i32
    return %arg0, %c0_i32 : i32, i32
  }
}

</mosaic_0001>

<llo_original>
// kernel: tpu_custom_call.1
$region0: #{tpu_custom_call.1}
  #allocation0 [shape = 'u32[]', space=smem, size = 0x4, offset = 0x4, fixed_abs, tag = 'smem constant byte address 0x4 - core index']
  #allocation1 [shape = 'u32[144,128]{1,0:T(1,128)}', space=vmem, size = 0x12000, scoped, tag = 'internal scratch']
  #allocation2 [shape = 'f32[1,1]{1,0:T(1,128)S(1)}', space=vmem, size = 0x200, scoped, tag = 'scoped memory for tpu_custom_call.1']
  %s0 = inlined_call_operand.vmem [shape: f32[8,4], index: 0, kind: input, shape index: {}]
  %s1 = inlined_call_operand.vmem [shape: f32[4,5], index: 1, kind: input, shape index: {}]
  %s2 = inlined_call_operand.vmem [shape: f32[1,5], index: 2, kind: input, shape index: {}]
  %s3 = inlined_call_operand.vmem [shape: f32[5,5], index: 3, kind: input, shape index: {}]
  %s4 = inlined_call_operand.vmem [shape: f32[1,5], index: 4, kind: input, shape index: {}]
  %s5 = inlined_call_operand.vmem [shape: f32[5,1], index: 5, kind: input, shape index: {}]
  %s6 = inlined_call_operand.<no memory space> [shape: f32[1,1], index: 6, kind: input, shape index: {}]
  %s7 = inlined_call_operand.vmem [shape: f32[8,1], index: 7, kind: output, shape index: {}]
  %s8 = sld [smem:[#allocation0]]
  $region38: #{tpu_custom_call.1} parent=0
    _
  %s10 = ssub.s32 1, %s8
  %s11 = scalar_select 0, %s10, %s8
  %v12 = vstv %s6
  %13 = vst [vmem:[#allocation2] sm:$0x1] %v12
  // Predicated region
  $region2: #{tpu_custom_call.1} parent=0 // pred_check
    _
  $region3: #{tpu_custom_call.1} parent=0 // pred_check_branch
    %15 = sbr.rel (0) target = $region5
  $region4: #{tpu_custom_call.1} parent=0 // pred_region
    _
  $region5: #{tpu_custom_call.1} parent=0 // pred_fallthru
    _
  // Predicated region
  $region6: #{tpu_custom_call.1} parent=0 // pred_check
    _
  $region7: #{tpu_custom_call.1} parent=0 // pred_check_branch
    %17 = sbr.rel (0) target = $region9
  $region8: #{tpu_custom_call.1} parent=0 // pred_region
    _
  $region9: #{tpu_custom_call.1} parent=0 // pred_fallthru
    _
  // Predicated region
  $region10: #{tpu_custom_call.1} parent=0 // pred_check
    _
  $region11: #{tpu_custom_call.1} parent=0 // pred_check_branch
    %19 = sbr.rel (0) target = $region13
  $region12: #{tpu_custom_call.1} parent=0 // pred_region
    _
  $region13: #{tpu_custom_call.1} parent=0 // pred_fallthru
    _
  // Predicated region
  $region14: #{tpu_custom_call.1} parent=0 // pred_check
    _
  $region15: #{tpu_custom_call.1} parent=0 // pred_check_branch
    %21 = sbr.rel (0) target = $region17
  $region16: #{tpu_custom_call.1} parent=0 // pred_region
    _
  $region17: #{tpu_custom_call.1} parent=0 // pred_fallthru
    _
  // Predicated region
  $region18: #{tpu_custom_call.1} parent=0 // pred_check
    _
  $region19: #{tpu_custom_call.1} parent=0 // pred_check_branch
    %23 = sbr.rel (0) target = $region21
  $region20: #{tpu_custom_call.1} parent=0 // pred_region
    _
  $region21: #{tpu_custom_call.1} parent=0 // pred_fallthru
    _
  // Predicated region
  $region22: #{tpu_custom_call.1} parent=0 // pred_check
    _
  $region23: #{tpu_custom_call.1} parent=0 // pred_check_branch
    %25 = sbr.rel (0) target = $region25
  $region24: #{tpu_custom_call.1} parent=0 // pred_region
    _
  $region25: #{tpu_custom_call.1} parent=0 // pred_fallthru
    _
  // Predicated region
  $region26: #{tpu_custom_call.1} parent=0 // pred_check
    _
  $region27: #{tpu_custom_call.1} parent=0 // pred_check_branch
    %27 = sbr.rel (0) target = $region29
  $region28: #{tpu_custom_call.1} parent=0 // pred_region
    _
  $region29: #{tpu_custom_call.1} parent=0 // pred_fallthru
    _
  %v28 = vld [vmem:[%s0] sm:$0xff]
  %v29 = vld [vmem:[%s2] sm:$0x1]
  %v31 = vlaneseq
  %v32 = vshrl.u32 %v31, 7
  %v33 = vsub.s32 0, %v32
  %v34 = vrot.slane %v29, %v33
  %v36 = vld [vmem:[%s1] sm:$0x1]
  %38 = vset.pattern.permute.xlu0 0
  %39 = vperm.xlu0 %38, %v28
  %v40 = vpop.permute.xlu0 %39
  %v42 = vlaneseq
  %v43 = vshrl.u32 %v42, 7
  %v44 = vsub.s32 0, %v43
  %v45 = vrot.slane %v36, %v44
  %v46 = vmul.f32 %v40, %v45
  %v47 = vadd.f32 %v34, %v46
  %v48 = vld [vmem:[%s1 + $0x1] sm:$0x1]
  %49 = vset.pattern.permute.xlu0 1
  %50 = vperm.xlu0 %49, %v28
  %v51 = vpop.permute.xlu0 %50
  %v53 = vlaneseq
  %v54 = vshrl.u32 %v53, 7
  %v55 = vsub.s32 0, %v54
  %v56 = vrot.slane %v48, %v55
  %v57 = vmul.f32 %v51, %v56
  %v58 = vadd.f32 %v47, %v57
  %v59 = vld [vmem:[%s1 + $0x2] sm:$0x1]
  %60 = vset.pattern.permute.xlu0 2
  %61 = vperm.xlu0 %60, %v28
  %v62 = vpop.permute.xlu0 %61
  %v64 = vlaneseq
  %v65 = vshrl.u32 %v64, 7
  %v66 = vsub.s32 0, %v65
  %v67 = vrot.slane %v59, %v66
  %v68 = vmul.f32 %v62, %v67
  %v69 = vadd.f32 %v58, %v68
  %v70 = vld [vmem:[%s1 + $0x3] sm:$0x1]
  %71 = vset.pattern.permute.xlu0 3
  %72 = vperm.xlu0 %71, %v28
  %v73 = vpop.permute.xlu0 %72
  %v75 = vlaneseq
  %v76 = vshrl.u32 %v75, 7
  %v77 = vsub.s32 0, %v76
  %v78 = vrot.slane %v70, %v77
  %v79 = vmul.f32 %v73, %v78
  %v80 = vadd.f32 %v69, %v79
  %v81 = vtanh.pop %v80
  %v82 = vld [vmem:[%s4] sm:$0x1]
  %v84 = vlaneseq
  %v85 = vshrl.u32 %v84, 7
  %v86 = vsub.s32 0, %v85
  %v87 = vrot.slane %v82, %v86
  %v89 = vld [vmem:[%s3] sm:$0x1]
  %91 = vset.pattern.permute.xlu0 0
  %92 = vperm.xlu0 %91, %v81
  %v93 = vpop.permute.xlu0 %92
  %v95 = vlaneseq
  %v96 = vshrl.u32 %v95, 7
  %v97 = vsub.s32 0, %v96
  %v98 = vrot.slane %v89, %v97
  %v99 = vmul.f32 %v93, %v98
  %v100 = vadd.f32 %v87, %v99
  %v101 = vld [vmem:[%s3 + $0x1] sm:$0x1]
  %102 = vset.pattern.permute.xlu0 1
  %103 = vperm.xlu0 %102, %v81
  %v104 = vpop.permute.xlu0 %103
  %v106 = vlaneseq
  %v107 = vshrl.u32 %v106, 7
  %v108 = vsub.s32 0, %v107
  %v109 = vrot.slane %v101, %v108
  %v110 = vmul.f32 %v104, %v109
  %v111 = vadd.f32 %v100, %v110
  %v112 = vld [vmem:[%s3 + $0x2] sm:$0x1]
  %113 = vset.pattern.permute.xlu0 2
  %114 = vperm.xlu0 %113, %v81
  %v115 = vpop.permute.xlu0 %114
  %v117 = vlaneseq
  %v118 = vshrl.u32 %v117, 7
  %v119 = vsub.s32 0, %v118
  %v120 = vrot.slane %v112, %v119
  %v121 = vmul.f32 %v115, %v120
  %v122 = vadd.f32 %v111, %v121
  %v123 = vld [vmem:[%s3 + $0x3] sm:$0x1]
  %124 = vset.pattern.permute.xlu0 3
  %125 = vperm.xlu0 %124, %v81
  %v126 = vpop.permute.xlu0 %125
  %v128 = vlaneseq
  %v129 = vshrl.u32 %v128, 7
  %v130 = vsub.s32 0, %v129
  %v131 = vrot.slane %v123, %v130
  %v132 = vmul.f32 %v126, %v131
  %v133 = vadd.f32 %v122, %v132
  %v134 = vld [vmem:[%s3 + $0x4] sm:$0x1]
  %135 = vset.pattern.permute.xlu0 4
  %136 = vperm.xlu0 %135, %v81
  %v137 = vpop.permute.xlu0 %136
  %v139 = vlaneseq
  %v140 = vshrl.u32 %v139, 7
  %v141 = vsub.s32 0, %v140
  %v142 = vrot.slane %v134, %v141
  %v143 = vmul.f32 %v137, %v142
  %v144 = vadd.f32 %v133, %v143
  %v145 = vtanh.pop %v144
  %v146 = vld [vmem:[#allocation2] sm:$0x1]
  %v148 = vlaneseq
  %v149 = vshrl.u32 %v148, 7
  %v150 = vsub.s32 0, %v149
  %v151 = vrot.slane %v146, %v150
  %v153 = vld [vmem:[%s5] sm:$0x1]
  %v154 = vlaneseq
  %v155 = vshrl.u32 %v154, 7
  %v156 = vsub.s32 0, %v155
  %v157 = vrot.slane %v153, %v156
  %v158 = vmul.f32 %v145, %v157
  %v159 = vadd.f32 %v151, %v158
  %v160 = vld [vmem:[%s5 + $0x1] sm:$0x1]
  %v161 = vlaneseq
  %v162 = vshrl.u32 %v161, 7
  %v163 = vsub.s32 0, %v162
  %v164 = vrot.slane %v160, %v163
  %166 = vrot.lane.b32.xlu0 %v164, 1
  %v167 = vpop.permute.xlu0 %166
  %v169 = vmul.f32 %v145, %v167
  %171 = vrot.lane.b32.xlu0 %v169, 127
  %v172 = vpop.permute.xlu0 %171
  %v174 = vadd.f32 %v159, %v172
  %v175 = vld [vmem:[%s5 + $0x2] sm:$0x1]
  %v176 = vlaneseq
  %v177 = vshrl.u32 %v176, 7
  %v178 = vsub.s32 0, %v177
  %v179 = vrot.slane %v175, %v178
  %181 = vrot.lane.b32.xlu0 %v179, 2
  %v182 = vpop.permute.xlu0 %181
  %v184 = vmul.f32 %v145, %v182
  %186 = vrot.lane.b32.xlu0 %v184, 126
  %v187 = vpop.permute.xlu0 %186
  %v189 = vadd.f32 %v174, %v187
  %v190 = vld [vmem:[%s5 + $0x3] sm:$0x1]
  %v191 = vlaneseq
  %v192 = vshrl.u32 %v191, 7
  %v193 = vsub.s32 0, %v192
  %v194 = vrot.slane %v190, %v193
  %196 = vrot.lane.b32.xlu0 %v194, 3
  %v197 = vpop.permute.xlu0 %196
  %v199 = vmul.f32 %v145, %v197
  %201 = vrot.lane.b32.xlu0 %v199, 125
  %v202 = vpop.permute.xlu0 %201
  %v204 = vadd.f32 %v189, %v202
  %v205 = vld [vmem:[%s5 + $0x4] sm:$0x1]
  %v206 = vlaneseq
  %v207 = vshrl.u32 %v206, 7
  %v208 = vsub.s32 0, %v207
  %v209 = vrot.slane %v205, %v208
  %211 = vrot.lane.b32.xlu0 %v209, 4
  %v212 = vpop.permute.xlu0 %211
  %v214 = vmul.f32 %v145, %v212
  %216 = vrot.lane.b32.xlu0 %v214, 124
  %v217 = vpop.permute.xlu0 %216
  %v219 = vadd.f32 %v204, %v217
  %v220 = vtanh.pop %v219
  %vm221 = vcmask 7168
  %222 = vst.msk [vmem:[%s7] sm:$0xff] %vm221, %v220
  // Predicated region
  $region30: #{tpu_custom_call.1} parent=0 // pred_check
    _
  $region31: #{tpu_custom_call.1} parent=0 // pred_check_branch
    %224 = sbr.rel (0) target = $region33
  $region32: #{tpu_custom_call.1} parent=0 // pred_region
    _
  $region33: #{tpu_custom_call.1} parent=0 // pred_fallthru
    _
  // Predicated region
  $region34: #{tpu_custom_call.1} parent=0 // pred_check
    _
  $region35: #{tpu_custom_call.1} parent=0 // pred_check_branch
    %226 = sbr.rel (0) target = $region37
  $region36: #{tpu_custom_call.1} parent=0 // pred_region
    _
  $region37: #{tpu_custom_call.1} parent=0 // pred_fallthru
    _

</llo_original>
